<compile_context>
chip_gen: v7x
topology: tpu7x:2x2x1
jax: 0.10.0
libtpu: 0.0.40
codegen_flags: <defaults>
</compile_context>

<pallas_src>
import jax
import jax.numpy as jnp
from jax.experimental import pallas as pl
from jax.experimental.pallas import tpu as pltpu


def _bbox_decode_kernel(mean_ref, std_ref, boxes_ref, deltas_ref, out_ref):
    # boxes_ref / deltas_ref: (TR, 128) blocks in VMEM (f32 or bf16), lanes are
    # the flattened (anchor, coord) stream: [x1 y1 x2 y2 | x1 y1 x2 y2 | ...].
    # mean_ref / std_ref: (4,) f32 in SMEM.  out_ref: (TR, 128) f32.
    b = boxes_ref[...].astype(jnp.float32)
    d = deltas_ref[...].astype(jnp.float32)
    tl = b.shape[-1]

    # Per-lane masks (1, TL), broadcast over sublanes.
    lane = jax.lax.broadcasted_iota(jnp.int32, (1, tl), 1)
    is_min = (lane & 3) < 2            # lanes holding x1/y1 -> emit x_min/y_min
    is_x = (lane & 1) == 0             # x-type lane vs y-type lane

    # Hoisted SMEM scalar loads folded into per-lane coefficient rows.
    m0, m1, m2, m3 = mean_ref[0], mean_ref[1], mean_ref[2], mean_ref[3]
    s0, s1, s2, s3 = std_ref[0], std_ref[1], std_ref[2], std_ref[3]
    std_off = jnp.where(is_x, s0, s1)
    mean_off = jnp.where(is_x, m0, m1)
    std_sz = jnp.where(is_x, s2, s3)
    mean_sz = jnp.where(is_x, m2, m3)

    # "min-lane view": at lane l, (b[l], b[l+2]) are (lo, hi) and
    # (d[l], d[l+2]) are (offset, size) deltas.  Exact at phases 0/1; phases
    # 2/3 recover the max coordinate from lane l-2 below.  The roll wraps only
    # at lanes whose results are discarded by the final select.
    b_hi = pltpu.roll(b, shift=tl - 2, axis=1)    # b[l + 2]
    d_hi = pltpu.roll(d, shift=tl - 2, axis=1)    # d[l + 2]

    size = b_hi - b                                    # width / height
    # ctr + (d*std + mean)*size  ==  b + (0.5 + d*std + mean)*size
    pred_ctr = b + (0.5 + d * std_off + mean_off) * size
    half = 0.5 * jnp.exp(d_hi * std_sz + mean_sz) * size   # 0.5*pred_w / 0.5*pred_h

    lo = pred_ctr - half                               # x_min / y_min at phases 0/1
    hi = pltpu.roll(pred_ctr + half, shift=2, axis=1)  # x_max / y_max moved to phases 2/3
    out_ref[...] = jnp.where(is_min, lo, hi)


def _round_up(x, m):
    return (x + m - 1) // m * m


def _decode_jnp(boxes, deltas, mean, std):
    """Plain-jnp decode; used for the tiny unaligned tail and as a reference."""
    boxes = boxes.astype(jnp.float32)
    deltas = deltas.astype(jnp.float32)
    widths = boxes[..., 2] - boxes[..., 0]
    heights = boxes[..., 3] - boxes[..., 1]
    ctr_x = boxes[..., 0] + 0.5 * widths
    ctr_y = boxes[..., 1] + 0.5 * heights
    dx = deltas[..., 0] * std[0] + mean[0]
    dy = deltas[..., 1] * std[1] + mean[1]
    dw = deltas[..., 2] * std[2] + mean[2]
    dh = deltas[..., 3] * std[3] + mean[3]
    pred_ctr_x = ctr_x + dx * widths
    pred_ctr_y = ctr_y + dy * heights
    pred_w = jnp.exp(dw) * widths
    pred_h = jnp.exp(dh) * heights
    return jnp.stack(
        [pred_ctr_x - 0.5 * pred_w, pred_ctr_y - 0.5 * pred_h,
         pred_ctr_x + 0.5 * pred_w, pred_ctr_y + 0.5 * pred_h],
        axis=-1,
    )


def _as_stream(x):
    """Keep f32 / bf16 as-is (upcast happens inside the kernel); else cast."""
    if x.dtype in (jnp.dtype(jnp.float32), jnp.dtype(jnp.bfloat16)):
        return x
    return x.astype(jnp.float32)


def bbox_transform(boxes, deltas, mean=None, std=None, *, block_rows=4096, lanes=128):
    """boxes, deltas: (B, N, 4). Returns decoded boxes (B, N, 4) float32."""
    if mean is None:
        mean = jnp.array([0.0, 0.0, 0.0, 0.0], dtype=jnp.float32)
    if std is None:
        std = jnp.array([0.1, 0.1, 0.2, 0.2], dtype=jnp.float32)
    mean = jnp.asarray(mean, jnp.float32).reshape(4)
    std = jnp.asarray(std, jnp.float32).reshape(4)

    assert lanes % 128 == 0
    B, N, C = boxes.shape
    assert C == 4 and deltas.shape == boxes.shape
    boxes = _as_stream(boxes)
    deltas = _as_stream(deltas)

    # Flat coordinate stream (free: contiguous, coords interleaved fastest).
    T = B * N * 4
    flat_b = boxes.reshape(-1)
    flat_d = deltas.reshape(-1)

    # Bulk part: the largest prefix whose length is a multiple of `lanes`
    # (always falls on an anchor boundary since lanes % 4 == 0).  The (rare)
    # <32-anchor tail is decoded with plain jnp — no whole-tensor pad/slice.
    main_T = (T // lanes) * lanes
    if main_T == 0:
        return _decode_jnp(boxes, deltas, mean, std)

    if main_T < T:
        main_b = flat_b[:main_T]
        main_d = flat_d[:main_T]
    else:
        main_b, main_d = flat_b, flat_d

    R = main_T // lanes
    boxes_2d = main_b.reshape(R, lanes)
    deltas_2d = main_d.reshape(R, lanes)

    # Balanced grid: even step count (both v7x TensorCores get near-equal
    # work), steps never larger than ~block_rows.  Row-block multiple of 16
    # satisfies both f32 (8) and bf16 (16) sublane tiling; ragged last block
    # is handled by Pallas masking.
    sub = 16
    pairs = max(1, pl.cdiv(R, 2 * block_rows))
    tr = max(sub, _round_up(pl.cdiv(R, 2 * pairs), sub))
    grid = (pl.cdiv(R, tr),)

    data_spec = pl.BlockSpec((tr, lanes), lambda i: (i, 0))
    smem_spec = pl.BlockSpec(memory_space=pltpu.MemorySpace.SMEM)

    bytes_accessed = main_T * (boxes_2d.dtype.itemsize + deltas_2d.dtype.itemsize + 4)
    out_2d = pl.pallas_call(
        _bbox_decode_kernel,
        out_shape=jax.ShapeDtypeStruct((R, lanes), jnp.float32),
        grid_spec=pl.GridSpec(
            grid=grid,
            in_specs=[smem_spec, smem_spec, data_spec, data_spec],
            out_specs=data_spec,
        ),
        compiler_params=pltpu.CompilerParams(
            dimension_semantics=("parallel",),
            vmem_limit_bytes=48 * 1024 * 1024,
            # Let XLA fuse the (rare) prefix slice / producer into the operand read.
            allow_input_fusion=[False, False, True, True],
        ),
        cost_estimate=pl.CostEstimate(
            flops=12 * main_T,
            transcendentals=main_T,
            bytes_accessed=bytes_accessed,
        ),
    )(mean, std, boxes_2d, deltas_2d)

    out_main = out_2d.reshape(main_T)
    if main_T < T:
        k = (T - main_T) // 4
        tail_b = flat_b[main_T:].reshape(1, k, 4)
        tail_d = flat_d[main_T:].reshape(1, k, 4)
        tail_out = _decode_jnp(tail_b, tail_d, mean, std).reshape(-1)
        out_f = jnp.concatenate([out_main, tail_out])
    else:
        out_f = out_main
    return out_f.reshape(B, N, 4)


if __name__ == "__main__":
    key = jax.random.PRNGKey(0)
    k1, k2, k3 = jax.random.split(key, 3)

    fn = jax.jit(bbox_transform)

    # Case 1: B*N*4 = 1600 (not a multiple of 128) -> kernel bulk + jnp tail.
    B, N = 2, 200
    xy_min = jax.random.uniform(k1, (B, N, 2), jnp.float32, minval=0.0, maxval=50.0)
    wh = jax.random.uniform(k2, (B, N, 2), jnp.float32, minval=1.0, maxval=30.0)
    boxes = jnp.concatenate([xy_min, xy_min + wh], axis=2)
    deltas = jax.random.normal(k3, (B, N, 4), jnp.float32)

    out = jax.block_until_ready(fn(boxes, deltas))
    ref = _decode_jnp(boxes, deltas,
                      jnp.array([0.0, 0.0, 0.0, 0.0], jnp.float32),
                      jnp.array([0.1, 0.1, 0.2, 0.2], jnp.float32))
    assert out.shape == (B, N, 4)
    assert jnp.allclose(out, ref, atol=1e-4, rtol=1e-5)

    # Case 2: aligned shape (zero-copy path) + non-default mean/std.
    k4, k5, k6 = jax.random.split(k3, 3)
    mean = jnp.array([0.01, -0.02, 0.03, -0.04], jnp.float32)
    std = jnp.array([0.1, 0.12, 0.2, 0.25], jnp.float32)
    xy2 = jax.random.uniform(k4, (2, 256, 2), jnp.float32, minval=0.0, maxval=50.0)
    wh2 = jax.random.uniform(k5, (2, 256, 2), jnp.float32, minval=1.0, maxval=30.0)
    boxes2 = jnp.concatenate([xy2, xy2 + wh2], axis=2)
    deltas2 = jax.random.normal(k6, (2, 256, 4), jnp.float32)
    out2 = jax.block_until_ready(fn(boxes2, deltas2, mean, std))
    ref2 = _decode_jnp(boxes2, deltas2, mean, std)
    assert jnp.allclose(out2, ref2, atol=1e-4, rtol=1e-5)

    # Case 3: bf16 inputs stream straight through the kernel (upcast in VMEM).
    boxes_bf = boxes2.astype(jnp.bfloat16)
    deltas_bf = deltas2.astype(jnp.bfloat16)
    out3 = jax.block_until_ready(fn(boxes_bf, deltas_bf, mean, std))
    ref3 = _decode_jnp(boxes_bf, deltas_bf, mean, std)
    assert out3.dtype == jnp.float32
    assert jnp.allclose(out3, ref3, atol=5e-2, rtol=1e-3)

    print("KERNEL_OK")
</pallas_src>

<mosaic_0001>
module attributes {stable_mosaic.version = 11 : i64} {
  func.func @_bbox_decode_kernel(%arg0: i32, %arg1: memref<4xf32, #tpu.memory_space<smem>>, %arg2: memref<4xf32, #tpu.memory_space<smem>>, %arg3: memref<16x128xf32, #tpu.memory_space<vmem>>, %arg4: memref<16x128xf32, #tpu.memory_space<vmem>>, %arg5: memref<16x128xf32, #tpu.memory_space<vmem>>) attributes {dimension_semantics = [#tpu.dimension_semantics<parallel>], iteration_bounds = array<i64: 1>, scalar_prefetch = 0 : i64, scratch_operands = 0 : i64, tpu.core_type = #tpu.core_type<tc>, window_params = [{transform_indices = @transform_0, window_bounds = array<i64: 4>}, {transform_indices = @transform_1, window_bounds = array<i64: 4>}, {transform_indices = @transform_2, window_bounds = array<i64: 16, 128>}, {transform_indices = @transform_3, window_bounds = array<i64: 16, 128>}, {transform_indices = @transform_4, window_bounds = array<i64: 16, 128>}]} {
    %c0 = arith.constant 0 : index
    %c0_0 = arith.constant 0 : index
    %0 = vector.load %arg3[%c0, %c0_0] : memref<16x128xf32, #tpu.memory_space<vmem>>, vector<16x128xf32>
    %c0_1 = arith.constant 0 : index
    %c0_2 = arith.constant 0 : index
    %1 = vector.load %arg4[%c0_1, %c0_2] : memref<16x128xf32, #tpu.memory_space<vmem>>, vector<16x128xf32>
    %2 = tpu.iota {dimensions = array<i32: 1>} : vector<1x128xi32>
    %c3_i32 = arith.constant 3 : i32
    %3 = vector.broadcast %c3_i32 : i32 to vector<1x128xi32>
    %4 = arith.andi %2, %3 : vector<1x128xi32>
    %c2_i32 = arith.constant 2 : i32
    %5 = vector.broadcast %c2_i32 : i32 to vector<1x128xi32>
    %6 = arith.cmpi slt, %4, %5 : vector<1x128xi32>
    %c1_i32 = arith.constant 1 : i32
    %7 = vector.broadcast %c1_i32 : i32 to vector<1x128xi32>
    %8 = arith.andi %2, %7 : vector<1x128xi32>
    %c0_i32 = arith.constant 0 : i32
    %9 = vector.broadcast %c0_i32 : i32 to vector<1x128xi32>
    %10 = arith.cmpi eq, %8, %9 : vector<1x128xi32>
    %c0_3 = arith.constant 0 : index
    %11 = memref.load %arg1[%c0_3] : memref<4xf32, #tpu.memory_space<smem>>
    %c1 = arith.constant 1 : index
    %12 = memref.load %arg1[%c1] : memref<4xf32, #tpu.memory_space<smem>>
    %c2 = arith.constant 2 : index
    %13 = memref.load %arg1[%c2] : memref<4xf32, #tpu.memory_space<smem>>
    %c3 = arith.constant 3 : index
    %14 = memref.load %arg1[%c3] : memref<4xf32, #tpu.memory_space<smem>>
    %c0_4 = arith.constant 0 : index
    %15 = memref.load %arg2[%c0_4] : memref<4xf32, #tpu.memory_space<smem>>
    %c1_5 = arith.constant 1 : index
    %16 = memref.load %arg2[%c1_5] : memref<4xf32, #tpu.memory_space<smem>>
    %c2_6 = arith.constant 2 : index
    %17 = memref.load %arg2[%c2_6] : memref<4xf32, #tpu.memory_space<smem>>
    %c3_7 = arith.constant 3 : index
    %18 = memref.load %arg2[%c3_7] : memref<4xf32, #tpu.memory_space<smem>>
    %19 = vector.broadcast %15 : f32 to vector<1x128xf32>
    %20 = vector.broadcast %16 : f32 to vector<1x128xf32>
    %21 = arith.select %10, %19, %20 : vector<1x128xi1>, vector<1x128xf32>
    %22 = vector.broadcast %11 : f32 to vector<1x128xf32>
    %23 = vector.broadcast %12 : f32 to vector<1x128xf32>
    %24 = arith.select %10, %22, %23 : vector<1x128xi1>, vector<1x128xf32>
    %25 = vector.broadcast %17 : f32 to vector<1x128xf32>
    %26 = vector.broadcast %18 : f32 to vector<1x128xf32>
    %27 = arith.select %10, %25, %26 : vector<1x128xi1>, vector<1x128xf32>
    %28 = vector.broadcast %13 : f32 to vector<1x128xf32>
    %29 = vector.broadcast %14 : f32 to vector<1x128xf32>
    %30 = arith.select %10, %28, %29 : vector<1x128xi1>, vector<1x128xf32>
    %c126_i32 = arith.constant 126 : i32
    %31 = tpu.dynamic_rotate %0 by %c126_i32 dim 1 : vector<16x128xf32>, i32 -> vector<16x128xf32>
    %c126_i32_8 = arith.constant 126 : i32
    %32 = tpu.dynamic_rotate %1 by %c126_i32_8 dim 1 : vector<16x128xf32>, i32 -> vector<16x128xf32>
    %33 = arith.subf %31, %0 : vector<16x128xf32>
    %34 = vector.broadcast %21 : vector<1x128xf32> to vector<16x128xf32>
    %35 = arith.mulf %1, %34 : vector<16x128xf32>
    %cst = arith.constant 5.000000e-01 : f32
    %36 = vector.broadcast %cst : f32 to vector<16x128xf32>
    %37 = arith.addf %36, %35 : vector<16x128xf32>
    %38 = vector.broadcast %24 : vector<1x128xf32> to vector<16x128xf32>
    %39 = arith.addf %37, %38 : vector<16x128xf32>
    %40 = arith.mulf %39, %33 : vector<16x128xf32>
    %41 = arith.addf %0, %40 : vector<16x128xf32>
    %42 = vector.broadcast %27 : vector<1x128xf32> to vector<16x128xf32>
    %43 = arith.mulf %32, %42 : vector<16x128xf32>
    %44 = vector.broadcast %30 : vector<1x128xf32> to vector<16x128xf32>
    %45 = arith.addf %43, %44 : vector<16x128xf32>
    %46 = math.exp %45 : vector<16x128xf32>
    %cst_9 = arith.constant 5.000000e-01 : f32
    %47 = vector.broadcast %cst_9 : f32 to vector<16x128xf32>
    %48 = arith.mulf %47, %46 : vector<16x128xf32>
    %49 = arith.mulf %48, %33 : vector<16x128xf32>
    %50 = arith.subf %41, %49 : vector<16x128xf32>
    %51 = arith.addf %41, %49 : vector<16x128xf32>
    %c2_i32_10 = arith.constant 2 : i32
    %52 = tpu.dynamic_rotate %51 by %c2_i32_10 dim 1 : vector<16x128xf32>, i32 -> vector<16x128xf32>
    %53 = vector.shape_cast %6 : vector<1x128xi1> to vector<1x128xi1>
    %54 = vector.broadcast %53 : vector<1x128xi1> to vector<16x128xi1>
    %55 = arith.select %54, %50, %52 : vector<16x128xi1>, vector<16x128xf32>
    %c0_11 = arith.constant 0 : index
    %c0_12 = arith.constant 0 : index
    %56 = vector.load %arg5[%c0_11, %c0_12] : memref<16x128xf32, #tpu.memory_space<vmem>>, vector<16x128xf32>
    tpu.vector_store %arg5[%c0_11, %c0_12], %55 {strides = array<i32>} : memref<16x128xf32, #tpu.memory_space<vmem>>, vector<16x128xf32>,
    return
  }
  func.func @transform_0(%arg0: i32) -> i32 {
    %c0_i32 = arith.constant 0 : i32
    %c0_i32_0 = arith.constant 0 : i32
    return %c0_i32 : i32
  }
  func.func @transform_1(%arg0: i32) -> i32 {
    %c0_i32 = arith.constant 0 : i32
    %c0_i32_0 = arith.constant 0 : i32
    return %c0_i32 : i32
  }
  func.func @transform_2(%arg0: i32) -> (i32, i32) {
    %c0_i32 = arith.constant 0 : i32
    %c0_i32_0 = arith.constant 0 : i32
    return %arg0, %c0_i32 : i32, i32
  }
  func.func @transform_3(%arg0: i32) -> (i32, i32) {
    %c0_i32 = arith.constant 0 : i32
    %c0_i32_0 = arith.constant 0 : i32
    return %arg0, %c0_i32 : i32, i32
  }
  func.func @transform_4(%arg0: i32) -> (i32, i32) {
    %c0_i32 = arith.constant 0 : i32
    %c0_i32_0 = arith.constant 0 : i32
    return %arg0, %c0_i32 : i32, i32
  }
}

</mosaic_0001>

<llo_original>
// kernel: bbox_transform.2
$region0: #{bbox_transform.2}
  #allocation0 [shape = 'u32[]', space=smem, size = 0x4, offset = 0x4, fixed_abs, tag = 'smem constant byte address 0x4 - core index']
  #allocation1 [shape = 'u32[144,128]{1,0:T(1,128)}', space=vmem, size = 0x12000, scoped, tag = 'internal scratch']
  #allocation2 [shape = 'u32[2048]{0}', space=vmem, size = 0x2000, scoped, tag = 'scoped memory for bbox_transform.2']
  #allocation3 [shape = 'u32[2048]{0}', space=vmem, size = 0x2000, scoped, tag = 'scoped memory for bbox_transform.2']
  #allocation4 [shape = 'u32[2048]{0}', space=vmem, size = 0x2000, scoped, tag = 'scoped memory for bbox_transform.2']
  #allocation5 [shape = 'u32[2048]{0}', space=vmem, size = 0x2000, scoped, tag = 'scoped memory for bbox_transform.2']
  #allocation6 [shape = 'u32[2048]{0}', space=vmem, size = 0x2000, scoped, tag = 'scoped memory for bbox_transform.2']
  #allocation7 [shape = 'u32[2048]{0}', space=vmem, size = 0x2000, scoped, tag = 'scoped memory for bbox_transform.2']
  #allocation8 [shape = 'u32[2048]{0}', space=vmem, size = 0x2000, scoped, tag = 'scoped memory for bbox_transform.2']
  #allocation9 [shape = 'u32[2048]{0}', space=vmem, size = 0x2000, scoped, tag = 'scoped memory for bbox_transform.2']
  #allocation10 [shape = 'u32[2048]{0}', space=vmem, size = 0x2000, scoped, tag = 'scoped memory for bbox_transform.2']
  #allocation11 [shape = 'u32[2048]{0}', space=vmem, size = 0x2000, scoped, tag = 'scoped memory for bbox_transform.2']
  %s0 = inlined_call_operand.vmem [shape: f32[4], index: 0, kind: input, shape index: {}]
  %s1 = inlined_call_operand.vmem [shape: f32[4], index: 1, kind: input, shape index: {}]
  %s2 = inlined_call_operand.vmem [shape: f32[1600], index: 2, kind: input, shape index: {}]
  %s3 = inlined_call_operand.vmem [shape: f32[1600], index: 3, kind: input, shape index: {}]
  %s4 = inlined_call_operand.vmem [shape: f32[12,128], index: 4, kind: output, shape index: {}]
  %s5 = sld [smem:[#allocation0]]
  $region34: #{bbox_transform.2} parent=0
    _
  %s7 = ssub.s32 1, %s5
  %s8 = scalar_select 0, %s7, %s5
  $region1: #{bbox_transform.2} parent=0
    #allocation12 [shape = 'u8[512]{0}', space=smem, size = 0x200, scoped, tag = 'input window, operand 0, single buffered']
    #allocation13 [shape = 's32[1]{0}', space=sflag, size = 0x4, scoped, tag = 'scoped memory for bbox_transform.2']
    #allocation14 [shape = 'u8[512]{0}', space=smem, size = 0x200, scoped, tag = 'input window, operand 1, single buffered']
    #allocation15 [shape = 's32[1]{0}', space=sflag, size = 0x4, scoped, tag = 'scoped memory for bbox_transform.2']
    #allocation16 [shape = 'u8[8192]{0}', space=vmem, size = 0x2000, dematerialized = true, scoped, tag = 'FusionAdapter Buffer %slice_bitcast_fusion.3 = f32[12,128]{1,0:T(8,128)} fusion(%param_3.2), kind=kLoop, calls=%fused_computation.2.clone.clone, metadata={op_name="jit(bbox_transform)/reshape" stack_frame_id=11}']
    #allocation17 [shape = 'u8[8192]{0}', space=vmem, size = 0x2000, dematerialized = true, scoped, tag = 'FusionAdapter Buffer %slice_bitcast_fusion.1 = f32[12,128]{1,0:T(8,128)} fusion(%param_2.1), kind=kLoop, calls=%fused_computation.clone.clone, metadata={op_name="jit(bbox_transform)/reshape" stack_frame_id=12}']
    %9 = vsyncpa [#allocation13], 0
    %10 = vsyncpa [#allocation15], 0
    // Predicated region
    $region2: #{bbox_transform.2} parent=1 // pred_check
      _
    $region3: #{bbox_transform.2} parent=1 // pred_check_branch
      %12 = sbr.rel (0) target = $region5
    $region4: #{bbox_transform.2} parent=1 // pred_region
      %s14 = ssub.s32 16, 16
      %15 = vsyncadd [#allocation13], %s14
      %s17 = sshll.u32 %s0, 4
      %s18 = int_to_ptr.vmem [resolvable:$true] %s17
      %20 = dma.vmem_to_smem %s18, 16, [#allocation12], [#allocation13]
    $region5: #{bbox_transform.2} parent=1 // pred_fallthru
      _
    // Predicated region
    $region6: #{bbox_transform.2} parent=1 // pred_check
      _
    $region7: #{bbox_transform.2} parent=1 // pred_check_branch
      %22 = sbr.rel (0) target = $region9
    $region8: #{bbox_transform.2} parent=1 // pred_region
      %s24 = ssub.s32 16, 16
      %25 = vsyncadd [#allocation15], %s24
      %s27 = sshll.u32 %s1, 4
      %s28 = int_to_ptr.vmem [resolvable:$true] %s27
      %30 = dma.vmem_to_smem %s28, 16, [#allocation14], [#allocation15]
    $region9: #{bbox_transform.2} parent=1 // pred_fallthru
      _
    // Predicated region
    $region10: #{bbox_transform.2} parent=1 // pred_check
      _
    $region11: #{bbox_transform.2} parent=1 // pred_check_branch
      %32 = sbr.rel (0) target = $region13
    $region12: #{bbox_transform.2} parent=1 // pred_region
      _
    $region13: #{bbox_transform.2} parent=1 // pred_fallthru
      _
    // Predicated region
    $region14: #{bbox_transform.2} parent=1 // pred_check
      _
    $region15: #{bbox_transform.2} parent=1 // pred_check_branch
      %34 = sbr.rel (0) target = $region17
    $region16: #{bbox_transform.2} parent=1 // pred_region
      _
    $region17: #{bbox_transform.2} parent=1 // pred_fallthru
      _
    // Predicated region
    $region18: #{bbox_transform.2} parent=1 // pred_check
      _
    $region19: #{bbox_transform.2} parent=1 // pred_check_branch
      %36 = sbr.rel (0) target = $region21
    $region20: #{bbox_transform.2} parent=1 // pred_region
      %37 = dma.done [#allocation13], 16
    $region21: #{bbox_transform.2} parent=1 // pred_fallthru
      _
    // Predicated region
    $region22: #{bbox_transform.2} parent=1 // pred_check
      _
    $region23: #{bbox_transform.2} parent=1 // pred_check_branch
      %39 = sbr.rel (0) target = $region25
    $region24: #{bbox_transform.2} parent=1 // pred_region
      %40 = dma.done [#allocation15], 16
    $region25: #{bbox_transform.2} parent=1 // pred_fallthru
      _
    %41 = sfence
    %v42 = vld [vmem:[%s3] sm:$0xff]
    %44 = vst [vmem:[#allocation16] sm:$0xff] %v42
    %s45 = scalar_lea.vmem %s3, 8
    %v46 = vld [vmem:[%s45] sm:$0xff]
    %s47 = scalar_lea.vmem [#allocation16], 8
    %49 = vst [vmem:[%s47] sm:$0xff] %v46
    %v50 = vld [vmem:[%s2] sm:$0xff]
    %52 = vst [vmem:[#allocation17] sm:$0xff] %v50
    %s53 = scalar_lea.vmem %s2, 8
    %v54 = vld [vmem:[%s53] sm:$0xff]
    %s55 = scalar_lea.vmem [#allocation17], 8
    %57 = vst [vmem:[%s55] sm:$0xff] %v54
    %v58 = vld [vmem:[#allocation16] sm:$0xff]
    %v59 = vld [vmem:[#allocation16 + $0x8] sm:$0xff]
    %v60 = vld [vmem:[#allocation17] sm:$0xff]
    %v61 = vld [vmem:[#allocation17 + $0x8] sm:$0xff]
    %v62 = vlaneseq
    %v63 = vand.u32 %v62, 127
    %v64 = vand.u32 %v63, 3
    %vm65 = vcmp.lt.s32.totalorder %v64, 2
    %v66 = vand.u32 %v63, 1
    %vm67 = vcmp.eq.s32.totalorder %v66, 0
    %s68 = sld [smem:[#allocation12]]
    %s69 = sld [smem:[#allocation12 + $0x1]]
    %s70 = sld [smem:[#allocation12 + $0x2]]
    %s71 = sld [smem:[#allocation12 + $0x3]]
    %s72 = sld [smem:[#allocation14]]
    %s73 = sld [smem:[#allocation14 + $0x1]]
    %s74 = sld [smem:[#allocation14 + $0x2]]
    %s75 = sld [smem:[#allocation14 + $0x3]]
    %v76 = vstv %s72
    %v77 = vstv %s73
    %v78 = vsel %vm67, %v76, %v77
    %v79 = vstv %s68
    %v80 = vstv %s69
    %v81 = vsel %vm67, %v79, %v80
    %v82 = vstv %s74
    %v83 = vstv %s75
    %v84 = vsel %vm67, %v82, %v83
    %v85 = vstv %s70
    %v86 = vstv %s71
    %v87 = vsel %vm67, %v85, %v86
    %88 = vrot.lane.b32.xlu0 %v58, 126
    %v89 = vpop.permute.xlu0 %88
    %90 = vrot.lane.b32.xlu0 %v59, 126
    %v91 = vpop.permute.xlu0 %90
    %92 = vrot.lane.b32.xlu0 %v60, 126
    %v93 = vpop.permute.xlu0 %92
    %94 = vrot.lane.b32.xlu0 %v61, 126
    %v95 = vpop.permute.xlu0 %94
    %v96 = vsub.f32 %v89, %v58
    %v97 = vsub.f32 %v91, %v59
    %v98 = vmul.f32 %v60, %v78
    %v99 = vmul.f32 %v61, %v78
    %v100 = vadd.f32 %v98, 0.5
    %v101 = vadd.f32 %v99, 0.5
    %v102 = vadd.f32 %v100, %v81
    %v103 = vadd.f32 %v101, %v81
    %v104 = vmul.f32 %v102, %v96
    %v105 = vmul.f32 %v103, %v97
    %v106 = vadd.f32 %v58, %v104
    %v107 = vadd.f32 %v59, %v105
    %v108 = vmul.f32 %v93, %v84
    %v109 = vmul.f32 %v95, %v84
    %v110 = vadd.f32 %v108, %v87
    %v111 = vadd.f32 %v109, %v87
    %v112 = vmul.f32 %v110, 1.442695
    %v113 = vpow.pop %v112
    %v114 = vmul.f32 %v111, 1.442695
    %v115 = vpow.pop %v114
    %v116 = vmul.f32 %v113, 0.5
    %v117 = vmul.f32 %v115, 0.5
    %v118 = vmul.f32 %v116, %v96
    %v119 = vmul.f32 %v117, %v97
    %v120 = vsub.f32 %v106, %v118
    %v121 = vsub.f32 %v107, %v119
    %v122 = vadd.f32 %v106, %v118
    %v123 = vadd.f32 %v107, %v119
    %124 = vrot.lane.b32.xlu0 %v122, 2
    %v125 = vpop.permute.xlu0 %124
    %126 = vrot.lane.b32.xlu0 %v123, 2
    %v127 = vpop.permute.xlu0 %126
    %v128 = vsel %vm65, 1, 0
    %vm129 = vcmp.eq.s32.totalorder %v128, 1
    %v130 = vsel %vm129, %v120, %v125
    %v131 = vsel %vm129, %v121, %v127
    %132 = vst [vmem:[%s4] sm:$0xff] %v130
    %133 = vst [vmem:[%s4 + $0x8] sm:$0xff] %v131
    // Predicated region
    $region26: #{bbox_transform.2} parent=1 // pred_check
      _
    $region27: #{bbox_transform.2} parent=1 // pred_check_branch
      %135 = sbr.rel (0) target = $region29
    $region28: #{bbox_transform.2} parent=1 // pred_region
      _
    $region29: #{bbox_transform.2} parent=1 // pred_fallthru
      _
    // Predicated region
    $region30: #{bbox_transform.2} parent=1 // pred_check
      _
    $region31: #{bbox_transform.2} parent=1 // pred_check_branch
      %137 = sbr.rel (0) target = $region33
    $region32: #{bbox_transform.2} parent=1 // pred_region
      _
    $region33: #{bbox_transform.2} parent=1 // pred_fallthru
      _
    %138 = vsyncpa [#allocation13], 1
    %139 = vsyncpa [#allocation15], 1

</llo_original>
